<compile_context>
chip_gen: v5e
topology: v5e:2x2
jax: 0.10.0
libtpu: 0.0.40
codegen_flags: <defaults>
</compile_context>

<pallas_src>
import functools

import jax
import jax.numpy as jnp
import numpy as np
from jax.experimental import pallas as pl
from jax.experimental.pallas import tpu as pltpu

LANE = 128


def _round_up(x, m):
    return ((x + m - 1) // m) * m


# ----------------------------------------------------------------------------
# Fused kernel (one batch tile): conv (all Ks) + ReLU + masked max-pool
# + FC + sigmoid.
#   x_ref   : (Bt*S, D)        bf16 embeddings for Bt sequences
#   wc_ref  : (Kmax*D, F_pad)  bf16 packed conv weights (tap-major rows)
#   bc_ref  : (1, F_pad)       f32 packed conv biases
#   mask_ref: (Bt*S, F_pad)    f32 0/1 per-branch valid-position mask
#   wf_ref  : (F_pad, C_pad)   bf16 FC weight, zero-padded lanes
#   bf_ref  : (1, C_pad)       f32 FC bias, zero-padded lanes
#   o_ref   : (Bt, C_pad)      f32 sigmoid(FC(...)), lane-dense
# ----------------------------------------------------------------------------
def _cnn_fused_kernel(x_ref, wc_ref, bc_ref, mask_ref, wf_ref, bf_ref, o_ref,
                      *, Ks, D, S, Bt):
    Kmax = max(Ks)
    rows = Bt * S
    F_pad = wc_ref.shape[1]

    x = x_ref[...]                                        # (rows, D) bf16

    # Tap-accumulated conv:  conv[t] = sum_k x[t + k] @ Wc[k]
    # computed as            conv    = sum_k roll(x @ Wc[k], -k, axis=0)
    # so the shift is one XLU sublane rotate of the lane-dense f32 product
    # instead of an unaligned relayout copy of the activations (im2col).
    # Rows that wrap across a sequence / tile boundary only ever land on
    # positions the validity mask zeroes out below, and taps k >= K_i hit
    # zero-padded weight rows for branch i, so they contribute nothing.
    acc = jnp.zeros((rows, F_pad), jnp.float32)
    for k in range(Kmax):
        y = jnp.dot(x, wc_ref[k * D:(k + 1) * D, :],      # (rows, F_pad) f32
                    preferred_element_type=jnp.float32)
        if k:
            y = pltpu.roll(y, shift=rows - k, axis=0)     # == roll by -k
        acc = acc + y

    conv = jnp.maximum(acc + bc_ref[...], 0.0)            # bias + ReLU (f32)

    # Zero out invalid conv positions per branch.  Safe post-ReLU: all valid
    # values are >= 0, so a 0 never wins the max (requires S >= max(Ks)).
    conv = conv * mask_ref[...]

    # max_pool1d over time per sequence: (Bt*S, F_pad) -> (Bt, F_pad).
    # S is a multiple of 8, so the reshape is a free sublane regroup and the
    # max is a single sublane reduction (no per-batch Python loop / concats).
    feats = conv.reshape(Bt, S, F_pad).max(axis=1)

    # Dropout: inference mode -> identity.  FC + sigmoid (f32 elementwise).
    logits = jnp.dot(feats.astype(jnp.bfloat16), wf_ref[...],
                     preferred_element_type=jnp.float32) + bf_ref[...]
    o_ref[...] = jax.nn.sigmoid(logits)


def cnn_head_fused(hidden, w_all, b_all, mask_tile, fc_w_pad, fc_b_pad,
                   *, Ks, Bt):
    """hidden: (B, S, D) f32 -> (B, C_pad) f32 (lane-dense; slice to C outside)."""
    B, S, D = hidden.shape
    assert B % Bt == 0, "batch must be divisible by the batch tile"
    Kmax = max(Ks)
    F_pad = w_all.shape[1]
    C_pad = fc_w_pad.shape[1]
    rows = Bt * S

    # bf16 activations: halves HBM->VMEM traffic and feeds the MXU natively.
    x2d = hidden.reshape(B * S, D).astype(jnp.bfloat16)

    kernel = functools.partial(_cnn_fused_kernel, Ks=tuple(Ks), D=D, S=S, Bt=Bt)
    # Per-step VMEM: 2 x (rows, D) bf16 activation buffers + resident weights
    # (Kmax*D, F_pad) bf16 + (rows, F_pad) mask/accumulator -- comfortably
    # inside the v7x 32 MiB scoped default even at real BERT shapes for small
    # Bt, so no vmem_limit_bytes override is needed.
    return pl.pallas_call(
        kernel,
        out_shape=jax.ShapeDtypeStruct((B, C_pad), jnp.float32),
        grid=(B // Bt,),
        in_specs=[
            pl.BlockSpec((rows, D), lambda i: (i, 0)),           # tiled activations
            pl.BlockSpec((Kmax * D, F_pad), lambda i: (0, 0)),   # resident weights
            pl.BlockSpec((1, F_pad), lambda i: (0, 0)),
            pl.BlockSpec((rows, F_pad), lambda i: (0, 0)),       # resident mask
            pl.BlockSpec((F_pad, C_pad), lambda i: (0, 0)),
            pl.BlockSpec((1, C_pad), lambda i: (0, 0)),
        ],
        out_specs=pl.BlockSpec((Bt, C_pad), lambda i: (i, 0)),
        compiler_params=pltpu.CompilerParams(
            dimension_semantics=("parallel",)),
    )(x2d, w_all, b_all, mask_tile, fc_w_pad, fc_b_pad)


# ----------------------------------------------------------------------------
# Parameter packing & forward glue.
# ----------------------------------------------------------------------------
def pack_fused_params(params, Ks, Co, D, C):
    """Pack per-branch conv weights + FC into lane-dense fused operands."""
    Kmax = max(Ks)
    F = len(Ks) * Co
    F_pad = _round_up(F, LANE)
    C_pad = _round_up(C, LANE)

    w_all = np.zeros((Kmax * D, F_pad), np.float32)
    b_all = np.zeros((1, F_pad), np.float32)
    for i, K in enumerate(Ks):
        w = np.asarray(params["conv_w"][i]).reshape(K * D, Co)   # (K,D,Co)->(K*D,Co)
        w_all[:K * D, i * Co:(i + 1) * Co] = w
        b_all[0, i * Co:(i + 1) * Co] = np.asarray(params["conv_b"][i])

    fc_w_pad = np.zeros((F_pad, C_pad), np.float32)
    fc_w_pad[:F, :C] = np.asarray(params["fc_w"])
    fc_b_pad = np.zeros((1, C_pad), np.float32)
    fc_b_pad[0, :C] = np.asarray(params["fc_b"])

    return (jnp.asarray(w_all, jnp.bfloat16),      # MXU operand -> bf16
            jnp.asarray(b_all, jnp.float32),
            jnp.asarray(fc_w_pad, jnp.bfloat16),   # MXU operand -> bf16
            jnp.asarray(fc_b_pad, jnp.float32))


def build_valid_mask(S, Bt, Ks, Co, F_pad):
    """(Bt*S, F_pad) 0/1 mask: position t valid for branch of size K iff t <= S-K."""
    t = np.arange(S)
    m = np.zeros((S, F_pad), np.float32)
    for i, K in enumerate(Ks):
        m[:, i * Co:(i + 1) * Co] = (t <= S - K).astype(np.float32)[:, None]
    return jnp.asarray(np.tile(m, (Bt, 1)))


def cnn_forward(token_ids, params, packed, mask_tile, Ks, C, Bt):
    # "BERT" embedding-layer output, i.e. hidden_states[0]: (B, S, D).
    hidden = params["embed_table"][token_ids]             # plain-JAX gather (glue)
    w_all, b_all, fc_w_pad, fc_b_pad = packed
    out_pad = cnn_head_fused(hidden, w_all, b_all, mask_tile,
                             fc_w_pad, fc_b_pad, Ks=Ks, Bt=Bt)
    return out_pad[:, :C]                                  # drop lane padding


def init_params(key, V, D, Co, Ks, C):
    ks = jax.random.split(key, 2 + 2 * len(Ks) + 2)
    embed_table = jax.random.normal(ks[0], (V, D), jnp.float32) * 0.02
    conv_w, conv_b = [], []
    for i, K in enumerate(Ks):
        fan_in = 1 * K * D
        bound = 1.0 / jnp.sqrt(fan_in)
        # torch Conv2d weight (Co, 1, K, D) -> our layout (K, D, Co)
        w = jax.random.uniform(ks[1 + 2 * i], (K, D, Co), jnp.float32,
                               -bound, bound)
        b = jax.random.uniform(ks[2 + 2 * i], (Co,), jnp.float32, -bound, bound)
        conv_w.append(w)
        conv_b.append(b)
    F_in = len(Ks) * Co
    bound = 1.0 / jnp.sqrt(F_in)
    fc_w = jax.random.uniform(ks[-2], (F_in, C), jnp.float32, -bound, bound)
    fc_b = jax.random.uniform(ks[-1], (C,), jnp.float32, -bound, bound)
    return {
        "embed_table": embed_table,
        "conv_w": conv_w,
        "conv_b": conv_b,
        "fc_w": fc_w,
        "fc_b": fc_b,
    }


if __name__ == "__main__":
    # Small, module-consistent shapes.  B=16 so the 1-D grid has 2 steps of
    # Bt=8 sequences each (exercises the batch tiling / parallel semantics).
    B = 16           # batch_size
    S = 16           # sequence length
    V = 100          # embed_num (vocab)
    D = 32           # embed_dim (== BERT hidden size in the original)
    Co = 8           # kernel_num
    Ks = (3, 4, 5)   # kernel_sizes
    C = 4            # class_num
    Bt = 8 if (B > 8 and B % 8 == 0) else B   # batch tile (8-aligned output block)

    key = jax.random.PRNGKey(0)
    k_ids, k_params = jax.random.split(key)
    token_ids = jax.random.randint(k_ids, (B, S), 0, V, dtype=jnp.int32)
    params = init_params(k_params, V, D, Co, Ks, C)
    packed = pack_fused_params(params, Ks, Co, D, C)
    F_pad = packed[0].shape[1]
    mask_tile = build_valid_mask(S, Bt, Ks, Co, F_pad)

    out = cnn_forward(token_ids, params, packed, mask_tile, Ks, C, Bt)
    out = jax.block_until_ready(out)
    assert out.shape == (B, C)

    # Numerical self-check against a float64 numpy reference of the module.
    # Tolerance reflects bf16 MXU operands (activations + weights).
    h = np.asarray(params["embed_table"])[np.asarray(token_ids)].astype(np.float64)
    feats_ref = []
    for i, K in enumerate(Ks):
        w = np.asarray(params["conv_w"][i], dtype=np.float64)    # (K, D, Co)
        bb = np.asarray(params["conv_b"][i], dtype=np.float64)
        L = S - K + 1
        conv = np.stack(
            [np.einsum("bkd,kdc->bc", h[:, t:t + K, :], w) for t in range(L)],
            axis=1) + bb                                          # (B, L, Co)
        feats_ref.append(np.maximum(conv, 0.0).max(axis=1))       # (B, Co)
    feats_ref = np.concatenate(feats_ref, axis=1)                 # (B, len(Ks)*Co)
    logits_ref = (feats_ref @ np.asarray(params["fc_w"], np.float64)
                  + np.asarray(params["fc_b"], np.float64))
    out_ref = 1.0 / (1.0 + np.exp(-logits_ref))
    np.testing.assert_allclose(np.asarray(out), out_ref, rtol=1e-2, atol=1e-2)

    assert bool(jnp.all((out >= 0.0) & (out <= 1.0)))
    print("KERNEL_OK")
</pallas_src>

<mosaic_0001>
module attributes {stable_mosaic.version = 11 : i64} {
  func.func @_cnn_fused_kernel(%arg0: i32, %arg1: memref<128x32xbf16, #tpu.memory_space<vmem>>, %arg2: memref<160x128xbf16, #tpu.memory_space<vmem>>, %arg3: memref<1x128xf32, #tpu.memory_space<vmem>>, %arg4: memref<128x128xf32, #tpu.memory_space<vmem>>, %arg5: memref<128x128xbf16, #tpu.memory_space<vmem>>, %arg6: memref<1x128xf32, #tpu.memory_space<vmem>>, %arg7: memref<8x128xf32, #tpu.memory_space<vmem>>) attributes {dimension_semantics = [#tpu.dimension_semantics<parallel>], iteration_bounds = array<i64: 2>, scalar_prefetch = 0 : i64, scratch_operands = 0 : i64, tpu.core_type = #tpu.core_type<tc>, window_params = [{transform_indices = @transform_0, window_bounds = array<i64: 128, 32>}, {pipeline_mode = #tpu.pipeline_mode<synchronous>, transform_indices = @transform_1, window_bounds = array<i64: 160, 128>}, {pipeline_mode = #tpu.pipeline_mode<synchronous>, transform_indices = @transform_2, window_bounds = array<i64: 1, 128>}, {pipeline_mode = #tpu.pipeline_mode<synchronous>, transform_indices = @transform_3, window_bounds = array<i64: 128, 128>}, {pipeline_mode = #tpu.pipeline_mode<synchronous>, transform_indices = @transform_4, window_bounds = array<i64: 128, 128>}, {pipeline_mode = #tpu.pipeline_mode<synchronous>, transform_indices = @transform_5, window_bounds = array<i64: 1, 128>}, {transform_indices = @transform_6, window_bounds = array<i64: 8, 128>}]} {
    %c0 = arith.constant 0 : index
    %c0_0 = arith.constant 0 : index
    %0 = vector.load %arg1[%c0, %c0_0] : memref<128x32xbf16, #tpu.memory_space<vmem>>, vector<128x32xbf16>
    %cst = arith.constant 0.000000e+00 : f32
    %1 = vector.broadcast %cst : f32 to vector<128x128xf32>
    %c0_1 = arith.constant 0 : index
    %c0_2 = arith.constant 0 : index
    %2 = vector.load %arg2[%c0_1, %c0_2] : memref<160x128xbf16, #tpu.memory_space<vmem>>, vector<32x128xbf16>
    %cst_3 = arith.constant dense<0.000000e+00> : vector<128x128xf32>
    %3 = tpu.matmul %0, %2, %cst_3 {dimension_numbers = #tpu.dot_dimension_numbers<[1], [0], [0], [1], [0, 0, 1, 1], [], []>} : vector<128x32xbf16>, vector<32x128xbf16>, vector<128x128xf32> -> vector<128x128xf32>
    %4 = arith.addf %1, %3 : vector<128x128xf32>
    %c32 = arith.constant 32 : index
    %c0_4 = arith.constant 0 : index
    %5 = vector.load %arg2[%c32, %c0_4] : memref<160x128xbf16, #tpu.memory_space<vmem>>, vector<32x128xbf16>
    %cst_5 = arith.constant dense<0.000000e+00> : vector<128x128xf32>
    %6 = tpu.matmul %0, %5, %cst_5 {dimension_numbers = #tpu.dot_dimension_numbers<[1], [0], [0], [1], [0, 0, 1, 1], [], []>} : vector<128x32xbf16>, vector<32x128xbf16>, vector<128x128xf32> -> vector<128x128xf32>
    %c127_i32 = arith.constant 127 : i32
    %7 = tpu.dynamic_rotate %6 by %c127_i32 dim 0 : vector<128x128xf32>, i32 -> vector<128x128xf32>
    %8 = arith.addf %4, %7 : vector<128x128xf32>
    %c64 = arith.constant 64 : index
    %c0_6 = arith.constant 0 : index
    %9 = vector.load %arg2[%c64, %c0_6] : memref<160x128xbf16, #tpu.memory_space<vmem>>, vector<32x128xbf16>
    %cst_7 = arith.constant dense<0.000000e+00> : vector<128x128xf32>
    %10 = tpu.matmul %0, %9, %cst_7 {dimension_numbers = #tpu.dot_dimension_numbers<[1], [0], [0], [1], [0, 0, 1, 1], [], []>} : vector<128x32xbf16>, vector<32x128xbf16>, vector<128x128xf32> -> vector<128x128xf32>
    %c126_i32 = arith.constant 126 : i32
    %11 = tpu.dynamic_rotate %10 by %c126_i32 dim 0 : vector<128x128xf32>, i32 -> vector<128x128xf32>
    %12 = arith.addf %8, %11 : vector<128x128xf32>
    %c96 = arith.constant 96 : index
    %c0_8 = arith.constant 0 : index
    %13 = vector.load %arg2[%c96, %c0_8] : memref<160x128xbf16, #tpu.memory_space<vmem>>, vector<32x128xbf16>
    %cst_9 = arith.constant dense<0.000000e+00> : vector<128x128xf32>
    %14 = tpu.matmul %0, %13, %cst_9 {dimension_numbers = #tpu.dot_dimension_numbers<[1], [0], [0], [1], [0, 0, 1, 1], [], []>} : vector<128x32xbf16>, vector<32x128xbf16>, vector<128x128xf32> -> vector<128x128xf32>
    %c125_i32 = arith.constant 125 : i32
    %15 = tpu.dynamic_rotate %14 by %c125_i32 dim 0 : vector<128x128xf32>, i32 -> vector<128x128xf32>
    %16 = arith.addf %12, %15 : vector<128x128xf32>
    %c128 = arith.constant 128 : index
    %c0_10 = arith.constant 0 : index
    %17 = vector.load %arg2[%c128, %c0_10] : memref<160x128xbf16, #tpu.memory_space<vmem>>, vector<32x128xbf16>
    %cst_11 = arith.constant dense<0.000000e+00> : vector<128x128xf32>
    %18 = tpu.matmul %0, %17, %cst_11 {dimension_numbers = #tpu.dot_dimension_numbers<[1], [0], [0], [1], [0, 0, 1, 1], [], []>} : vector<128x32xbf16>, vector<32x128xbf16>, vector<128x128xf32> -> vector<128x128xf32>
    %c124_i32 = arith.constant 124 : i32
    %19 = tpu.dynamic_rotate %18 by %c124_i32 dim 0 : vector<128x128xf32>, i32 -> vector<128x128xf32>
    %20 = arith.addf %16, %19 : vector<128x128xf32>
    %c0_12 = arith.constant 0 : index
    %c0_13 = arith.constant 0 : index
    %21 = vector.load %arg3[%c0_12, %c0_13] : memref<1x128xf32, #tpu.memory_space<vmem>>, vector<1x128xf32>
    %22 = vector.broadcast %21 : vector<1x128xf32> to vector<128x128xf32>
    %23 = arith.addf %20, %22 : vector<128x128xf32>
    %cst_14 = arith.constant 0.000000e+00 : f32
    %24 = vector.broadcast %cst_14 : f32 to vector<128x128xf32>
    %25 = arith.maximumf %23, %24 : vector<128x128xf32>
    %c0_15 = arith.constant 0 : index
    %c0_16 = arith.constant 0 : index
    %26 = vector.load %arg4[%c0_15, %c0_16] : memref<128x128xf32, #tpu.memory_space<vmem>>, vector<128x128xf32>
    %27 = arith.mulf %25, %26 : vector<128x128xf32>
    %28 = vector.shape_cast %27 : vector<128x128xf32> to vector<8x16x128xf32>
    %cst_17 = arith.constant dense<0xFF800000> : vector<8x128xf32>
    %29 = vector.multi_reduction <maximumf>, %28, %cst_17 [1] : vector<8x16x128xf32> to vector<8x128xf32>
    %30 = arith.truncf %29 : vector<8x128xf32> to vector<8x128xbf16>
    %c0_18 = arith.constant 0 : index
    %c0_19 = arith.constant 0 : index
    %31 = vector.load %arg5[%c0_18, %c0_19] : memref<128x128xbf16, #tpu.memory_space<vmem>>, vector<128x128xbf16>
    %cst_20 = arith.constant dense<0.000000e+00> : vector<8x128xf32>
    %32 = tpu.matmul %30, %31, %cst_20 {dimension_numbers = #tpu.dot_dimension_numbers<[1], [0], [0], [1], [0, 0, 1, 1], [], []>} : vector<8x128xbf16>, vector<128x128xbf16>, vector<8x128xf32> -> vector<8x128xf32>
    %c0_21 = arith.constant 0 : index
    %c0_22 = arith.constant 0 : index
    %33 = vector.load %arg6[%c0_21, %c0_22] : memref<1x128xf32, #tpu.memory_space<vmem>>, vector<1x128xf32>
    %34 = vector.broadcast %33 : vector<1x128xf32> to vector<8x128xf32>
    %35 = arith.addf %32, %34 : vector<8x128xf32>
    %36 = arith.negf %35 : vector<8x128xf32>
    %37 = math.exp %36 : vector<8x128xf32>
    %cst_23 = arith.constant 1.000000e+00 : f32
    %38 = vector.broadcast %cst_23 : f32 to vector<8x128xf32>
    %39 = arith.addf %38, %37 : vector<8x128xf32>
    %40 = arith.divf %38, %39 : vector<8x128xf32>
    %c0_24 = arith.constant 0 : index
    %c0_25 = arith.constant 0 : index
    %41 = vector.load %arg7[%c0_24, %c0_25] : memref<8x128xf32, #tpu.memory_space<vmem>>, vector<8x128xf32>
    tpu.vector_store %arg7[%c0_24, %c0_25], %40 {strides = array<i32>} : memref<8x128xf32, #tpu.memory_space<vmem>>, vector<8x128xf32>,
    return
  }
  func.func @transform_0(%arg0: i32) -> (i32, i32) {
    %c0_i32 = arith.constant 0 : i32
    %c0_i32_0 = arith.constant 0 : i32
    return %arg0, %c0_i32 : i32, i32
  }
  func.func @transform_1(%arg0: i32) -> (i32, i32) {
    %c0_i32 = arith.constant 0 : i32
    %c0_i32_0 = arith.constant 0 : i32
    %c0_i32_1 = arith.constant 0 : i32
    return %c0_i32, %c0_i32_0 : i32, i32
  }
  func.func @transform_2(%arg0: i32) -> (i32, i32) {
    %c0_i32 = arith.constant 0 : i32
    %c0_i32_0 = arith.constant 0 : i32
    %c0_i32_1 = arith.constant 0 : i32
    return %c0_i32, %c0_i32_0 : i32, i32
  }
  func.func @transform_3(%arg0: i32) -> (i32, i32) {
    %c0_i32 = arith.constant 0 : i32
    %c0_i32_0 = arith.constant 0 : i32
    %c0_i32_1 = arith.constant 0 : i32
    return %c0_i32, %c0_i32_0 : i32, i32
  }
  func.func @transform_4(%arg0: i32) -> (i32, i32) {
    %c0_i32 = arith.constant 0 : i32
    %c0_i32_0 = arith.constant 0 : i32
    %c0_i32_1 = arith.constant 0 : i32
    return %c0_i32, %c0_i32_0 : i32, i32
  }
  func.func @transform_5(%arg0: i32) -> (i32, i32) {
    %c0_i32 = arith.constant 0 : i32
    %c0_i32_0 = arith.constant 0 : i32
    %c0_i32_1 = arith.constant 0 : i32
    return %c0_i32, %c0_i32_0 : i32, i32
  }
  func.func @transform_6(%arg0: i32) -> (i32, i32) {
    %c0_i32 = arith.constant 0 : i32
    %c0_i32_0 = arith.constant 0 : i32
    return %arg0, %c0_i32 : i32, i32
  }
}

</mosaic_0001>

<llo_original>
// kernel: tpu_custom_call.1
$region0: #{tpu_custom_call.1}
  #allocation0 [shape = 'u32[]', space=smem, size = 0x4, offset = 0x4, fixed_abs, tag = 'smem constant byte address 0x4 - core index']
  #allocation1 [shape = 'u32[72,128]{1,0:T(1,128)}', space=vmem, size = 0x9000, scoped, tag = 'internal scratch']
  %s0 = inlined_call_operand.vmem [shape: bf16[256,32], index: 0, kind: input, shape index: {}]
  %s1 = inlined_call_operand.hbm [shape: bf16[160,128], index: 1, kind: input, shape index: {}]
  %s2 = inlined_call_operand.vmem [shape: f32[1,128], index: 2, kind: input, shape index: {}]
  %s3 = inlined_call_operand.vmem [shape: f32[128,128], index: 3, kind: input, shape index: {}]
  %s4 = inlined_call_operand.hbm [shape: bf16[128,128], index: 4, kind: input, shape index: {}]
  %s5 = inlined_call_operand.vmem [shape: f32[1,128], index: 5, kind: input, shape index: {}]
  %s6 = inlined_call_operand.hbm [shape: f32[16,128], index: 6, kind: output, shape index: {}]
  %s7 = sld [smem:[#allocation0]]
  $region65: #{tpu_custom_call.1} parent=0
    _
  %s9 = ssub.s32 1, %s7
  %s10 = scalar_select 0, %s9, %s7
  $region1: #{tpu_custom_call.1} parent=0
    #allocation2 [shape = 'u8[40960]{0}', space=vmem, size = 0xa000, scoped, tag = 'input window, operand 1, single buffered']
    #allocation3 [shape = 's32[2]{0}', space=sflag, size = 0x8, scoped, tag = 'scoped memory for tpu_custom_call.1']
    #allocation4 [shape = 's32[2]{0}', space=sflag, size = 0x8, scoped, tag = 'scoped memory for tpu_custom_call.1']
    #allocation5 [shape = 'u8[32768]{0}', space=vmem, size = 0x8000, scoped, tag = 'input window, operand 4, single buffered']
    #allocation6 [shape = 's32[1]{0}', space=sflag, size = 0x4, scoped, tag = 'scoped memory for tpu_custom_call.1']
    #allocation7 [shape = 'u8[8192]{0}', space=vmem, size = 0x2000, scoped, tag = 'output window, operand 0']
    %11 = vsyncpa [#allocation3], 0
    %12 = vsyncpa [#allocation6], 0
    %13 = vsyncpa [#allocation4], 0
    %s14 = scalar_lea.sflag [#allocation4], 1
    %15 = vsyncpa %s14, 0
    loop: start=0, step=1, limit=4
    $region2: #{tpu_custom_call.1} parent=1 // loop_pre_header
      _
    $region3: #{tpu_custom_call.1} parent=1 // loop_header
      %s17 = sphi 0, %s21
      %p18 = scmp.ge.s32.totalorder %s17, 4
      %s27 = sphi 0, %s29
      %s30 = sphi 0, %s27
      %s31 = sphi 0, %s30
      %s47 = sphi 0, %s31
      %s51 = sphi 0, %s51
      %s53 = sphi 0, %s51
      %s54 = sphi 0, %s53
      %s68 = sphi 0, %s54
      %s72 = sphi 0, %s72
      %s74 = sphi 0, %s72
      %s75 = sphi 0, %s74
      %s89 = sphi 0, %s75
      %s93 = sphi 0, %s93
      %s95 = sphi 0, %s93
      %s96 = sphi 0, %s95
      %s110 = sphi 0, %s96
      %s114 = sphi 0, %s114
      %s116 = sphi 0, %s114
      %s117 = sphi 0, %s116
      %s131 = sphi 0, %s117
      %s135 = sphi 0, %s135
      %s137 = sphi 0, %s135
      %s138 = sphi 0, %s137
      %s152 = sphi 0, %s138
      %s158 = sphi 0, %s160
      %s161 = sphi 0, %s158
      %s162 = sphi 0, %s161
      %s178 = sphi 0, %s162
    $region4: #{tpu_custom_call.1} parent=1 // loop_header_branch
      %20 = sbr.rel (%p18) target = $region8
    $region5: #{tpu_custom_call.1} parent=1 // loop_body
      %s22 = ssub.s32 %s17, 1
      %s23 = ssub.s32 %s17, 2
      %s24 = sadd.s32 %s17, 1
      %s25 = ssub.s32 %s17, %s24
      %p26 = scmp.eq.s32.totalorder %s25, 0
      %s28 = sadd.s32 %s27, 1
      %s29 = scalar_select %p26, %s27, %s28
      %p32 = pneg %p26
      %p33 = scmp.eq.s32.totalorder %s17, 1
      %p34 = por %p32, %p33
      %p35 = scmp.ne.s32.totalorder %s27, %s30
      %p36 = scmp.eq.s32.totalorder %s17, 0
      %p37 = por %p35, %p36
      %p38 = scmp.ne.s32.totalorder %s27, %s30
      %p39 = scmp.eq.s32.totalorder %s22, 1
      %p40 = por %p38, %p39
      %p41 = scmp.ne.s32.totalorder %s30, %s31
      %p42 = scmp.eq.s32.totalorder %s22, 0
      %p43 = por %p41, %p42
      %p44 = scmp.ne.s32.totalorder %s30, %s31
      %p45 = scmp.eq.s32.totalorder %s23, 1
      %p46 = por %p44, %p45
      %p48 = scmp.ne.s32.totalorder %s31, %s47
      %p49 = scmp.eq.s32.totalorder %s23, 0
      %p50 = por %p48, %p49
      %s52 = sadd.s32 %s51, 1
      %p55 = scmp.eq.s32.totalorder %s17, 1
      %p56 = scmp.ne.s32.totalorder %s51, %s53
      %p57 = scmp.eq.s32.totalorder %s17, 0
      %p58 = por %p56, %p57
      %p59 = scmp.ne.s32.totalorder %s51, %s53
      %p60 = scmp.eq.s32.totalorder %s22, 1
      %p61 = por %p59, %p60
      %p62 = scmp.ne.s32.totalorder %s53, %s54
      %p63 = scmp.eq.s32.totalorder %s22, 0
      %p64 = por %p62, %p63
      %p65 = scmp.ne.s32.totalorder %s53, %s54
      %p66 = scmp.eq.s32.totalorder %s23, 1
      %p67 = por %p65, %p66
      %p69 = scmp.ne.s32.totalorder %s54, %s68
      %p70 = scmp.eq.s32.totalorder %s23, 0
      %p71 = por %p69, %p70
      %s73 = sadd.s32 %s72, 1
      %p76 = scmp.eq.s32.totalorder %s17, 1
      %p77 = scmp.ne.s32.totalorder %s72, %s74
      %p78 = scmp.eq.s32.totalorder %s17, 0
      %p79 = por %p77, %p78
      %p80 = scmp.ne.s32.totalorder %s72, %s74
      %p81 = scmp.eq.s32.totalorder %s22, 1
      %p82 = por %p80, %p81
      %p83 = scmp.ne.s32.totalorder %s74, %s75
      %p84 = scmp.eq.s32.totalorder %s22, 0
      %p85 = por %p83, %p84
      %p86 = scmp.ne.s32.totalorder %s74, %s75
      %p87 = scmp.eq.s32.totalorder %s23, 1
      %p88 = por %p86, %p87
      %p90 = scmp.ne.s32.totalorder %s75, %s89
      %p91 = scmp.eq.s32.totalorder %s23, 0
      %p92 = por %p90, %p91
      %s94 = sadd.s32 %s93, 1
      %p97 = scmp.eq.s32.totalorder %s17, 1
      %p98 = scmp.ne.s32.totalorder %s93, %s95
      %p99 = scmp.eq.s32.totalorder %s17, 0
      %p100 = por %p98, %p99
      %p101 = scmp.ne.s32.totalorder %s93, %s95
      %p102 = scmp.eq.s32.totalorder %s22, 1
      %p103 = por %p101, %p102
      %p104 = scmp.ne.s32.totalorder %s95, %s96
      %p105 = scmp.eq.s32.totalorder %s22, 0
      %p106 = por %p104, %p105
      %p107 = scmp.ne.s32.totalorder %s95, %s96
      %p108 = scmp.eq.s32.totalorder %s23, 1
      %p109 = por %p107, %p108
      %p111 = scmp.ne.s32.totalorder %s96, %s110
      %p112 = scmp.eq.s32.totalorder %s23, 0
      %p113 = por %p111, %p112
      %s115 = sadd.s32 %s114, 1
      %p118 = scmp.eq.s32.totalorder %s17, 1
      %p119 = scmp.ne.s32.totalorder %s114, %s116
      %p120 = scmp.eq.s32.totalorder %s17, 0
      %p121 = por %p119, %p120
      %p122 = scmp.ne.s32.totalorder %s114, %s116
      %p123 = scmp.eq.s32.totalorder %s22, 1
      %p124 = por %p122, %p123
      %p125 = scmp.ne.s32.totalorder %s116, %s117
      %p126 = scmp.eq.s32.totalorder %s22, 0
      %p127 = por %p125, %p126
      %p128 = scmp.ne.s32.totalorder %s116, %s117
      %p129 = scmp.eq.s32.totalorder %s23, 1
      %p130 = por %p128, %p129
      %p132 = scmp.ne.s32.totalorder %s117, %s131
      %p133 = scmp.eq.s32.totalorder %s23, 0
      %p134 = por %p132, %p133
      %s136 = sadd.s32 %s135, 1
      %p139 = scmp.eq.s32.totalorder %s17, 1
      %p140 = scmp.ne.s32.totalorder %s135, %s137
      %p141 = scmp.eq.s32.totalorder %s17, 0
      %p142 = por %p140, %p141
      %p143 = scmp.ne.s32.totalorder %s135, %s137
      %p144 = scmp.eq.s32.totalorder %s22, 1
      %p145 = por %p143, %p144
      %p146 = scmp.ne.s32.totalorder %s137, %s138
      %p147 = scmp.eq.s32.totalorder %s22, 0
      %p148 = por %p146, %p147
      %p149 = scmp.ne.s32.totalorder %s137, %s138
      %p150 = scmp.eq.s32.totalorder %s23, 1
      %p151 = por %p149, %p150
      %p153 = scmp.ne.s32.totalorder %s138, %s152
      %p154 = scmp.eq.s32.totalorder %s23, 0
      %p155 = por %p153, %p154
      %s156 = ssub.s32 %s17, %s24
      %p157 = scmp.eq.s32.totalorder %s156, 0
      %s159 = sadd.s32 %s158, 1
      %s160 = scalar_select %p157, %s158, %s159
      %p163 = pneg %p157
      %p164 = scmp.eq.s32.totalorder %s17, 1
      %p165 = por %p163, %p164
      %p166 = scmp.ne.s32.totalorder %s158, %s161
      %p167 = scmp.eq.s32.totalorder %s17, 0
      %p168 = por %p166, %p167
      %p169 = scmp.ne.s32.totalorder %s158, %s161
      %p170 = scmp.eq.s32.totalorder %s22, 1
      %p171 = por %p169, %p170
      %p172 = scmp.ne.s32.totalorder %s161, %s162
      %p173 = scmp.eq.s32.totalorder %s22, 0
      %p174 = por %p172, %p173
      %p175 = scmp.ne.s32.totalorder %s161, %s162
      %p176 = scmp.eq.s32.totalorder %s23, 1
      %p177 = por %p175, %p176
      %p179 = scmp.ne.s32.totalorder %s162, %s178
      %p180 = scmp.eq.s32.totalorder %s23, 0
      %p181 = por %p179, %p180
      %p182 = scmp.le.s32.totalorder 1, %s17
      %p183 = scmp.lt.s32.totalorder %s17, 3
      %p184 = pnand %p182, %p183
      %p185 = pneg %p184
      // Predicated region
      $region9: #{tpu_custom_call.1} parent=5 // pred_check
        _
      $region10: #{tpu_custom_call.1} parent=5 // pred_check_branch
        %187 = sbr.rel (%p184) target = $region12
      $region11: #{tpu_custom_call.1} parent=5 // pred_region
        %s188 = ssub.s32 %s17, 1
        // Predicated region
        $region13: #{tpu_custom_call.1} parent=11 // pred_check
          %p189 = pneg %p64
        $region14: #{tpu_custom_call.1} parent=11 // pred_check_branch
          %191 = sbr.rel (%p189) target = $region16
        $region15: #{tpu_custom_call.1} parent=11 // pred_region
          %193 = vsyncadd [#allocation3], 0
          %s194 = sshll.u32 %s1, 4
          %s195 = int_to_ptr.hbm [resolvable:$true] %s194
          %s196 = sshll.u32 [#allocation2], 4
          %s197 = int_to_ptr.vmem [resolvable:$true] %s196
          %202 = dma.hbm_to_vmem [thread:$0]  %s195, 1280, %s197, [#allocation3], 64, 64, 4
        $region16: #{tpu_custom_call.1} parent=11 // pred_fallthru
          _
        // Predicated region
        $region17: #{tpu_custom_call.1} parent=11 // pred_check
          %p203 = pneg %p85
        $region18: #{tpu_custom_call.1} parent=11 // pred_check_branch
          %205 = sbr.rel (%p203) target = $region20
        $region19: #{tpu_custom_call.1} parent=11 // pred_region
          _
        $region20: #{tpu_custom_call.1} parent=11 // pred_fallthru
          _
        // Predicated region
        $region21: #{tpu_custom_call.1} parent=11 // pred_check
          %p206 = pneg %p106
        $region22: #{tpu_custom_call.1} parent=11 // pred_check_branch
          %208 = sbr.rel (%p206) target = $region24
        $region23: #{tpu_custom_call.1} parent=11 // pred_region
          _
        $region24: #{tpu_custom_call.1} parent=11 // pred_fallthru
          _
        // Predicated region
        $region25: #{tpu_custom_call.1} parent=11 // pred_check
          %p209 = pneg %p127
        $region26: #{tpu_custom_call.1} parent=11 // pred_check_branch
          %211 = sbr.rel (%p209) target = $region28
        $region27: #{tpu_custom_call.1} parent=11 // pred_region
          %213 = vsyncadd [#allocation6], 0
          %s214 = sshll.u32 %s4, 4
          %s215 = int_to_ptr.hbm [resolvable:$true] %s214
          %s216 = sshll.u32 [#allocation5], 4
          %s217 = int_to_ptr.vmem [resolvable:$true] %s216
          %222 = dma.hbm_to_vmem [thread:$0]  %s215, 1024, %s217, [#allocation6], 64, 64, 4
        $region28: #{tpu_custom_call.1} parent=11 // pred_fallthru
          _
        // Predicated region
        $region29: #{tpu_custom_call.1} parent=11 // pred_check
          %p223 = pneg %p148
        $region30: #{tpu_custom_call.1} parent=11 // pred_check_branch
          %225 = sbr.rel (%p223) target = $region32
        $region31: #{tpu_custom_call.1} parent=11 // pred_region
          _
        $region32: #{tpu_custom_call.1} parent=11 // pred_fallthru
          _
      $region12: #{tpu_custom_call.1} parent=5 // pred_fallthru
        _
      %p226 = scmp.lt.s32.totalorder %s17, 2
      // Predicated region
      $region33: #{tpu_custom_call.1} parent=5 // pred_check
        %p227 = pneg %p226
      $region34: #{tpu_custom_call.1} parent=5 // pred_check_branch
        %229 = sbr.rel (%p227) target = $region36
      $region35: #{tpu_custom_call.1} parent=5 // pred_region
        // Predicated region
        $region37: #{tpu_custom_call.1} parent=35 // pred_check
          %p230 = pneg %p37
        $region38: #{tpu_custom_call.1} parent=35 // pred_check_branch
          %232 = sbr.rel (%p230) target = $region40
        $region39: #{tpu_custom_call.1} parent=35 // pred_region
          %s233 = smul.u32 16, %s17
          %p234 = scmp.lt.s32.totalorder %s233, 31
          %s235 = scalar_select %p234, %s233, 31
          %s236 = smul.addr %s235, 4
          %s237 = scalar_lea.vmem %s0, %s236
          %s238 = smul.u32 16, %s17
        $region40: #{tpu_custom_call.1} parent=35 // pred_fallthru
          _
      $region36: #{tpu_custom_call.1} parent=5 // pred_fallthru
        _
      %p239 = scmp.le.s32.totalorder 1, %s17
      %p240 = scmp.lt.s32.totalorder %s17, 3
      %p241 = pnand %p239, %p240
      %p242 = pneg %p241
      // Predicated region
      $region41: #{tpu_custom_call.1} parent=5 // pred_check
        _
      $region42: #{tpu_custom_call.1} parent=5 // pred_check_branch
        %244 = sbr.rel (%p241) target = $region44
      $region43: #{tpu_custom_call.1} parent=5 // pred_region
        %s245 = ssub.s32 %s17, 1
        // Predicated region
        $region45: #{tpu_custom_call.1} parent=43 // pred_check
          %p246 = pneg %p64
        $region46: #{tpu_custom_call.1} parent=43 // pred_check_branch
          %248 = sbr.rel (%p246) target = $region48
        $region47: #{tpu_custom_call.1} parent=43 // pred_region
          %250 = dma.done [#allocation3], 1280
        $region48: #{tpu_custom_call.1} parent=43 // pred_fallthru
          _
        // Predicated region
        $region49: #{tpu_custom_call.1} parent=43 // pred_check
          %p251 = pneg %p127
        $region50: #{tpu_custom_call.1} parent=43 // pred_check_branch
          %253 = sbr.rel (%p251) target = $region52
        $region51: #{tpu_custom_call.1} parent=43 // pred_region
          %255 = dma.done [#allocation6], 1024
        $region52: #{tpu_custom_call.1} parent=43 // pred_fallthru
          _
        %s256 = smul.u32 16, %s22
        %p257 = scmp.lt.s32.totalorder %s256, 31
        %s258 = scalar_select %p257, %s256, 31
        %s259 = smul.addr %s258, 4
        %s260 = scalar_lea.vmem %s0, %s259
        %p261 = pneg %p43
        %p262 = pneg %p40
        %p263 = pneg %p64
        %p264 = pneg %p61
        %p265 = pneg %p85
        %p266 = pneg %p82
        %p267 = pneg %p106
        %p268 = pneg %p103
        %p269 = pneg %p127
        %p270 = pneg %p124
        %p271 = pneg %p148
        %p272 = pneg %p145
        %p273 = pneg %p174
        %p274 = pneg %p171
        %s275 = sand.u32 %s161, 1
        %s276 = scalar_lea.sflag [#allocation4], %s275
        %s277 = sand.u32 %s161, 1
        %s278 = smul.addr %s277, 8
        %s279 = scalar_lea.vmem [#allocation7], %s278
        %s280 = smul.u32 16, %s22
        %p281 = scmp.lt.s32.totalorder %s280, 31
        %s282 = scalar_select %p281, %s280, 31
        %s283 = smul.addr %s282, 4
        %s284 = scalar_lea.vmem %s0, %s283
        %s285 = smul.u32 16, %s22
        %v287 = vld [vmem:[%s284] sm:$0xf]
        %v288 = vld [vmem:[%s284 + $0x4] sm:$0xf]
        %v289 = vld [vmem:[%s284 + $0x8] sm:$0xf]
        %v290 = vld [vmem:[%s284 + $0xc] sm:$0xf]
        %v291 = vld [vmem:[%s284 + $0x10] sm:$0xf]
        %v292 = vld [vmem:[%s284 + $0x14] sm:$0xf]
        %v293 = vld [vmem:[%s284 + $0x18] sm:$0xf]
        %v294 = vld [vmem:[%s284 + $0x1c] sm:$0xf]
        %v295 = vld [vmem:[%s284 + $0x20] sm:$0xf]
        %v296 = vld [vmem:[%s284 + $0x24] sm:$0xf]
        %v297 = vld [vmem:[%s284 + $0x28] sm:$0xf]
        %v298 = vld [vmem:[%s284 + $0x2c] sm:$0xf]
        %v299 = vld [vmem:[%s284 + $0x30] sm:$0xf]
        %v300 = vld [vmem:[%s284 + $0x34] sm:$0xf]
        %v301 = vld [vmem:[%s284 + $0x38] sm:$0xf]
        %v302 = vld [vmem:[%s284 + $0x3c] sm:$0xf]
        %v303 = vld [vmem:[#allocation2] sm:$0xf]
        %v304 = vld [vmem:[#allocation2 + $0x4] sm:$0xf]
        %v305 = vld [vmem:[#allocation2 + $0x8] sm:$0xf]
        %v306 = vld [vmem:[#allocation2 + $0xc] sm:$0xf]
        %v307 = vld [vmem:[#allocation2 + $0x10] sm:$0xf]
        %v308 = vld [vmem:[#allocation2 + $0x14] sm:$0xf]
        %v309 = vld [vmem:[#allocation2 + $0x18] sm:$0xf]
        %v310 = vld [vmem:[#allocation2 + $0x1c] sm:$0xf]
        %v327 = vunpack.c.l.b16 %v287
        %v328 = vunpack.c.l.b16 %v288
        %v329 = vunpack.c.l.b16 %v289
        %v330 = vunpack.c.l.b16 %v290
        %v331 = vunpack.c.l.b16 %v291
        %v332 = vunpack.c.l.b16 %v292
        %v333 = vunpack.c.l.b16 %v293
        %v334 = vunpack.c.l.b16 %v294
        %v335 = vunpack.c.l.b16 %v295
        %v336 = vunpack.c.l.b16 %v296
        %v337 = vunpack.c.l.b16 %v297
        %v338 = vunpack.c.l.b16 %v298
        %v339 = vunpack.c.l.b16 %v299
        %v340 = vunpack.c.l.b16 %v300
        %v341 = vunpack.c.l.b16 %v301
        %v342 = vunpack.c.l.b16 %v302
        %v343 = vpack.c.b16 %v328, %v327
        %v344 = vpack.c.b16 %v330, %v329
        %v345 = vpack.c.b16 %v332, %v331
        %v346 = vpack.c.b16 %v334, %v333
        %v347 = vpack.c.b16 %v336, %v335
        %v348 = vpack.c.b16 %v338, %v337
        %v349 = vpack.c.b16 %v340, %v339
        %v350 = vpack.c.b16 %v342, %v341
        %v355 = vunpack.c.l.b16 %v307
        %v356 = vunpack.c.l.b16 %v308
        %v357 = vunpack.c.l.b16 %v309
        %v358 = vunpack.c.l.b16 %v310
        %v359 = vpack.c.b16 %v356, %v355
        %v360 = vpack.c.b16 %v358, %v357
        %vm363 = vcmask 261120
        %v365 = vsel %vm363, %v343, 0
        %v368 = vsel %vm363, %v344, 0
        %v371 = vsel %vm363, %v345, 0
        %v374 = vsel %vm363, %v346, 0
        %v377 = vsel %vm363, %v347, 0
        %v380 = vsel %vm363, %v348, 0
        %v383 = vsel %vm363, %v349, 0
        %v386 = vsel %vm363, %v350, 0
        %388 = vmatpush.bf16.msra.mxu0 0
        %389 = vmatpush.bf16.msra.mxu0 0
        %390 = vmatpush.bf16.msra.mxu0 0
        %391 = vmatpush.bf16.msra.mxu0 0
        %392 = vmatpush.bf16.msra.mxu0 0
        %393 = vmatpush.bf16.msra.mxu0 0
        %394 = vmatpush.bf16.msra.mxu0 %v360
        %395 = vmatpush.bf16.msra.mxu0 %v359
        %396 = vmatmul.bf16.gmra.mxu0 %v365
        %v397 = vpop.f32.mrf.mxu0
        %v398 = vadd.f32 0.0, %v397
        %v399 = vpop.f32.mrf.mxu0
        %v400 = vadd.f32 0.0, %v399
        %401 = vmatmul.bf16.gmra.mxu0 %v368
        %v402 = vpop.f32.mrf.mxu0
        %v403 = vadd.f32 0.0, %v402
        %v404 = vpop.f32.mrf.mxu0
        %v405 = vadd.f32 0.0, %v404
        %406 = vmatmul.bf16.gmra.mxu0 %v371
        %v407 = vpop.f32.mrf.mxu0
        %v408 = vadd.f32 0.0, %v407
        %v409 = vpop.f32.mrf.mxu0
        %v410 = vadd.f32 0.0, %v409
        %411 = vmatmul.bf16.gmra.mxu0 %v374
        %v412 = vpop.f32.mrf.mxu0
        %v413 = vadd.f32 0.0, %v412
        %v414 = vpop.f32.mrf.mxu0
        %v415 = vadd.f32 0.0, %v414
        %416 = vmatmul.bf16.gmra.mxu0 %v377
        %v417 = vpop.f32.mrf.mxu0
        %v418 = vadd.f32 0.0, %v417
        %v419 = vpop.f32.mrf.mxu0
        %v420 = vadd.f32 0.0, %v419
        %421 = vmatmul.bf16.gmra.mxu0 %v380
        %v422 = vpop.f32.mrf.mxu0
        %v423 = vadd.f32 0.0, %v422
        %v424 = vpop.f32.mrf.mxu0
        %v425 = vadd.f32 0.0, %v424
        %426 = vmatmul.bf16.gmra.mxu0 %v383
        %v427 = vpop.f32.mrf.mxu0
        %v428 = vadd.f32 0.0, %v427
        %v429 = vpop.f32.mrf.mxu0
        %v430 = vadd.f32 0.0, %v429
        %431 = vmatmul.bf16.gmra.mxu0 %v386
        %v432 = vpop.f32.mrf.mxu0
        %v433 = vadd.f32 0.0, %v432
        %v434 = vpop.f32.mrf.mxu0
        %v435 = vadd.f32 0.0, %v434
        %436 = vdwg.mxu0
        %v437 = vrot.slane %v398, 1
        %v438 = vrot.slane %v400, 1
        %v439 = vrot.slane %v403, 1
        %v440 = vrot.slane %v405, 1
        %v441 = vrot.slane %v408, 1
        %v442 = vrot.slane %v410, 1
        %v443 = vrot.slane %v413, 1
        %v444 = vrot.slane %v415, 1
        %v445 = vrot.slane %v418, 1
        %v446 = vrot.slane %v420, 1
        %v447 = vrot.slane %v423, 1
        %v448 = vrot.slane %v425, 1
        %v449 = vrot.slane %v428, 1
        %v450 = vrot.slane %v430, 1
        %v451 = vrot.slane %v433, 1
        %v452 = vrot.slane %v435, 1
        %v453 = vlaneseq
        %v454 = vshrl.u32 %v453, 7
        %vm455 = vcmp.lt.s32.totalorder %v454, 7
        %v456 = vsel %vm455, %v451, %v452
        %v457 = vsel %vm455, %v450, %v451
        %v458 = vsel %vm455, %v449, %v450
        %v459 = vsel %vm455, %v448, %v449
        %v460 = vsel %vm455, %v447, %v448
        %v461 = vsel %vm455, %v446, %v447
        %v462 = vsel %vm455, %v445, %v446
        %v463 = vsel %vm455, %v444, %v445
        %v464 = vsel %vm455, %v443, %v444
        %v465 = vsel %vm455, %v442, %v443
        %v466 = vsel %vm455, %v441, %v442
        %v467 = vsel %vm455, %v440, %v441
        %v468 = vsel %vm455, %v439, %v440
        %v469 = vsel %vm455, %v438, %v439
        %v470 = vsel %vm455, %v437, %v438
        %v471 = vsel %vm455, %v452, %v437
        %v476 = vunpack.c.l.b16 %v303
        %v477 = vunpack.c.l.b16 %v304
        %v478 = vunpack.c.l.b16 %v305
        %v479 = vunpack.c.l.b16 %v306
        %v480 = vpack.c.b16 %v477, %v476
        %v481 = vpack.c.b16 %v479, %v478
        %484 = vmatpush.bf16.msra.mxu0 0
        %485 = vmatpush.bf16.msra.mxu0 0
        %486 = vmatpush.bf16.msra.mxu0 0
        %487 = vmatpush.bf16.msra.mxu0 0
        %488 = vmatpush.bf16.msra.mxu0 0
        %489 = vmatpush.bf16.msra.mxu0 0
        %490 = vmatpush.bf16.msra.mxu0 %v481
        %491 = vmatpush.bf16.msra.mxu0 %v480
        %492 = vmatmul.bf16.gmra.mxu0 %v365
        %v493 = vpop.f32.mrf.mxu0
        %v494 = vadd.f32 %v470, %v493
        %v495 = vpop.f32.mrf.mxu0
        %v496 = vadd.f32 %v469, %v495
        %497 = vmatmul.bf16.gmra.mxu0 %v368
        %v498 = vpop.f32.mrf.mxu0
        %v499 = vadd.f32 %v468, %v498
        %v500 = vpop.f32.mrf.mxu0
        %v501 = vadd.f32 %v467, %v500
        %502 = vmatmul.bf16.gmra.mxu0 %v371
        %v503 = vpop.f32.mrf.mxu0
        %v504 = vadd.f32 %v466, %v503
        %v505 = vpop.f32.mrf.mxu0
        %v506 = vadd.f32 %v465, %v505
        %507 = vmatmul.bf16.gmra.mxu0 %v374
        %v508 = vpop.f32.mrf.mxu0
        %v509 = vadd.f32 %v464, %v508
        %v510 = vpop.f32.mrf.mxu0
        %v511 = vadd.f32 %v463, %v510
        %512 = vmatmul.bf16.gmra.mxu0 %v377
        %v513 = vpop.f32.mrf.mxu0
        %v514 = vadd.f32 %v462, %v513
        %v515 = vpop.f32.mrf.mxu0
        %v516 = vadd.f32 %v461, %v515
        %517 = vmatmul.bf16.gmra.mxu0 %v380
        %v518 = vpop.f32.mrf.mxu0
        %v519 = vadd.f32 %v460, %v518
        %v520 = vpop.f32.mrf.mxu0
        %v521 = vadd.f32 %v459, %v520
        %522 = vmatmul.bf16.gmra.mxu0 %v383
        %v523 = vpop.f32.mrf.mxu0
        %v524 = vadd.f32 %v458, %v523
        %v525 = vpop.f32.mrf.mxu0
        %v526 = vadd.f32 %v457, %v525
        %527 = vmatmul.bf16.gmra.mxu0 %v386
        %v528 = vpop.f32.mrf.mxu0
        %v529 = vadd.f32 %v456, %v528
        %v530 = vpop.f32.mrf.mxu0
        %v531 = vadd.f32 %v471, %v530
        %532 = vdwg.mxu0
        %v533 = vld [vmem:[#allocation2 + $0x20] sm:$0xf]
        %v534 = vld [vmem:[#allocation2 + $0x24] sm:$0xf]
        %v535 = vld [vmem:[#allocation2 + $0x28] sm:$0xf]
        %v536 = vld [vmem:[#allocation2 + $0x2c] sm:$0xf]
        %v541 = vunpack.c.l.b16 %v533
        %v542 = vunpack.c.l.b16 %v534
        %v543 = vunpack.c.l.b16 %v535
        %v544 = vunpack.c.l.b16 %v536
        %v545 = vpack.c.b16 %v542, %v541
        %v546 = vpack.c.b16 %v544, %v543
        %549 = vmatpush.bf16.msra.mxu0 0
        %550 = vmatpush.bf16.msra.mxu0 0
        %551 = vmatpush.bf16.msra.mxu0 0
        %552 = vmatpush.bf16.msra.mxu0 0
        %553 = vmatpush.bf16.msra.mxu0 0
        %554 = vmatpush.bf16.msra.mxu0 0
        %555 = vmatpush.bf16.msra.mxu0 %v546
        %556 = vmatpush.bf16.msra.mxu0 %v545
        %557 = vmatmul.bf16.gmra.mxu0 %v365
        %v558 = vpop.f32.mrf.mxu0
        %v559 = vadd.f32 0.0, %v558
        %v560 = vpop.f32.mrf.mxu0
        %v561 = vadd.f32 0.0, %v560
        %562 = vmatmul.bf16.gmra.mxu0 %v368
        %v563 = vpop.f32.mrf.mxu0
        %v564 = vadd.f32 0.0, %v563
        %v565 = vpop.f32.mrf.mxu0
        %v566 = vadd.f32 0.0, %v565
        %567 = vmatmul.bf16.gmra.mxu0 %v371
        %v568 = vpop.f32.mrf.mxu0
        %v569 = vadd.f32 0.0, %v568
        %v570 = vpop.f32.mrf.mxu0
        %v571 = vadd.f32 0.0, %v570
        %572 = vmatmul.bf16.gmra.mxu0 %v374
        %v573 = vpop.f32.mrf.mxu0
        %v574 = vadd.f32 0.0, %v573
        %v575 = vpop.f32.mrf.mxu0
        %v576 = vadd.f32 0.0, %v575
        %577 = vmatmul.bf16.gmra.mxu0 %v377
        %v578 = vpop.f32.mrf.mxu0
        %v579 = vadd.f32 0.0, %v578
        %v580 = vpop.f32.mrf.mxu0
        %v581 = vadd.f32 0.0, %v580
        %582 = vmatmul.bf16.gmra.mxu0 %v380
        %v583 = vpop.f32.mrf.mxu0
        %v584 = vadd.f32 0.0, %v583
        %v585 = vpop.f32.mrf.mxu0
        %v586 = vadd.f32 0.0, %v585
        %587 = vmatmul.bf16.gmra.mxu0 %v383
        %v588 = vpop.f32.mrf.mxu0
        %v589 = vadd.f32 0.0, %v588
        %v590 = vpop.f32.mrf.mxu0
        %v591 = vadd.f32 0.0, %v590
        %592 = vmatmul.bf16.gmra.mxu0 %v386
        %v593 = vpop.f32.mrf.mxu0
        %v594 = vadd.f32 0.0, %v593
        %v595 = vpop.f32.mrf.mxu0
        %v596 = vadd.f32 0.0, %v595
        %597 = vdwg.mxu0
        %v598 = vrot.slane %v559, 2
        %v599 = vrot.slane %v561, 2
        %v600 = vrot.slane %v564, 2
        %v601 = vrot.slane %v566, 2
        %v602 = vrot.slane %v569, 2
        %v603 = vrot.slane %v571, 2
        %v604 = vrot.slane %v574, 2
        %v605 = vrot.slane %v576, 2
        %v606 = vrot.slane %v579, 2
        %v607 = vrot.slane %v581, 2
        %v608 = vrot.slane %v584, 2
        %v609 = vrot.slane %v586, 2
        %v610 = vrot.slane %v589, 2
        %v611 = vrot.slane %v591, 2
        %v612 = vrot.slane %v594, 2
        %v613 = vrot.slane %v596, 2
        %vm614 = vcmp.lt.s32.totalorder %v454, 6
        %v615 = vsel %vm614, %v612, %v613
        %v616 = vsel %vm614, %v611, %v612
        %v617 = vsel %vm614, %v610, %v611
        %v618 = vsel %vm614, %v609, %v610
        %v619 = vsel %vm614, %v608, %v609
        %v620 = vsel %vm614, %v607, %v608
        %v621 = vsel %vm614, %v606, %v607
        %v622 = vsel %vm614, %v605, %v606
        %v623 = vsel %vm614, %v604, %v605
        %v624 = vsel %vm614, %v603, %v604
        %v625 = vsel %vm614, %v602, %v603
        %v626 = vsel %vm614, %v601, %v602
        %v627 = vsel %vm614, %v600, %v601
        %v628 = vsel %vm614, %v599, %v600
        %v629 = vsel %vm614, %v598, %v599
        %v630 = vsel %vm614, %v613, %v598
        %v631 = vadd.f32 %v494, %v629
        %v632 = vadd.f32 %v496, %v628
        %v633 = vadd.f32 %v499, %v627
        %v634 = vadd.f32 %v501, %v626
        %v635 = vadd.f32 %v504, %v625
        %v636 = vadd.f32 %v506, %v624
        %v637 = vadd.f32 %v509, %v623
        %v638 = vadd.f32 %v511, %v622
        %v639 = vadd.f32 %v514, %v621
        %v640 = vadd.f32 %v516, %v620
        %v641 = vadd.f32 %v519, %v619
        %v642 = vadd.f32 %v521, %v618
        %v643 = vadd.f32 %v524, %v617
        %v644 = vadd.f32 %v526, %v616
        %v645 = vadd.f32 %v529, %v615
        %v646 = vadd.f32 %v531, %v630
        %v647 = vld [vmem:[#allocation2 + $0x30] sm:$0xf]
        %v648 = vld [vmem:[#allocation2 + $0x34] sm:$0xf]
        %v649 = vld [vmem:[#allocation2 + $0x38] sm:$0xf]
        %v650 = vld [vmem:[#allocation2 + $0x3c] sm:$0xf]
        %v655 = vunpack.c.l.b16 %v647
        %v656 = vunpack.c.l.b16 %v648
        %v657 = vunpack.c.l.b16 %v649
        %v658 = vunpack.c.l.b16 %v650
        %v659 = vpack.c.b16 %v656, %v655
        %v660 = vpack.c.b16 %v658, %v657
        %663 = vmatpush.bf16.msra.mxu0 0
        %664 = vmatpush.bf16.msra.mxu0 0
        %665 = vmatpush.bf16.msra.mxu0 0
        %666 = vmatpush.bf16.msra.mxu0 0
        %667 = vmatpush.bf16.msra.mxu0 0
        %668 = vmatpush.bf16.msra.mxu0 0
        %669 = vmatpush.bf16.msra.mxu0 %v660
        %670 = vmatpush.bf16.msra.mxu0 %v659
        %671 = vmatmul.bf16.gmra.mxu0 %v365
        %v672 = vpop.f32.mrf.mxu0
        %v673 = vadd.f32 0.0, %v672
        %v674 = vpop.f32.mrf.mxu0
        %v675 = vadd.f32 0.0, %v674
        %676 = vmatmul.bf16.gmra.mxu0 %v368
        %v677 = vpop.f32.mrf.mxu0
        %v678 = vadd.f32 0.0, %v677
        %v679 = vpop.f32.mrf.mxu0
        %v680 = vadd.f32 0.0, %v679
        %681 = vmatmul.bf16.gmra.mxu0 %v371
        %v682 = vpop.f32.mrf.mxu0
        %v683 = vadd.f32 0.0, %v682
        %v684 = vpop.f32.mrf.mxu0
        %v685 = vadd.f32 0.0, %v684
        %686 = vmatmul.bf16.gmra.mxu0 %v374
        %v687 = vpop.f32.mrf.mxu0
        %v688 = vadd.f32 0.0, %v687
        %v689 = vpop.f32.mrf.mxu0
        %v690 = vadd.f32 0.0, %v689
        %691 = vmatmul.bf16.gmra.mxu0 %v377
        %v692 = vpop.f32.mrf.mxu0
        %v693 = vadd.f32 0.0, %v692
        %v694 = vpop.f32.mrf.mxu0
        %v695 = vadd.f32 0.0, %v694
        %696 = vmatmul.bf16.gmra.mxu0 %v380
        %v697 = vpop.f32.mrf.mxu0
        %v698 = vadd.f32 0.0, %v697
        %v699 = vpop.f32.mrf.mxu0
        %v700 = vadd.f32 0.0, %v699
        %701 = vmatmul.bf16.gmra.mxu0 %v383
        %v702 = vpop.f32.mrf.mxu0
        %v703 = vadd.f32 0.0, %v702
        %v704 = vpop.f32.mrf.mxu0
        %v705 = vadd.f32 0.0, %v704
        %706 = vmatmul.bf16.gmra.mxu0 %v386
        %v707 = vpop.f32.mrf.mxu0
        %v708 = vadd.f32 0.0, %v707
        %v709 = vpop.f32.mrf.mxu0
        %v710 = vadd.f32 0.0, %v709
        %711 = vdwg.mxu0
        %v712 = vrot.slane %v673, 3
        %v713 = vrot.slane %v675, 3
        %v714 = vrot.slane %v678, 3
        %v715 = vrot.slane %v680, 3
        %v716 = vrot.slane %v683, 3
        %v717 = vrot.slane %v685, 3
        %v718 = vrot.slane %v688, 3
        %v719 = vrot.slane %v690, 3
        %v720 = vrot.slane %v693, 3
        %v721 = vrot.slane %v695, 3
        %v722 = vrot.slane %v698, 3
        %v723 = vrot.slane %v700, 3
        %v724 = vrot.slane %v703, 3
        %v725 = vrot.slane %v705, 3
        %v726 = vrot.slane %v708, 3
        %v727 = vrot.slane %v710, 3
        %vm728 = vcmp.lt.s32.totalorder %v454, 5
        %v729 = vsel %vm728, %v726, %v727
        %v730 = vsel %vm728, %v725, %v726
        %v731 = vsel %vm728, %v724, %v725
        %v732 = vsel %vm728, %v723, %v724
        %v733 = vsel %vm728, %v722, %v723
        %v734 = vsel %vm728, %v721, %v722
        %v735 = vsel %vm728, %v720, %v721
        %v736 = vsel %vm728, %v719, %v720
        %v737 = vsel %vm728, %v718, %v719
        %v738 = vsel %vm728, %v717, %v718
        %v739 = vsel %vm728, %v716, %v717
        %v740 = vsel %vm728, %v715, %v716
        %v741 = vsel %vm728, %v714, %v715
        %v742 = vsel %vm728, %v713, %v714
        %v743 = vsel %vm728, %v712, %v713
        %v744 = vsel %vm728, %v727, %v712
        %v745 = vadd.f32 %v631, %v743
        %v746 = vadd.f32 %v632, %v742
        %v747 = vadd.f32 %v633, %v741
        %v748 = vadd.f32 %v634, %v740
        %v749 = vadd.f32 %v635, %v739
        %v750 = vadd.f32 %v636, %v738
        %v751 = vadd.f32 %v637, %v737
        %v752 = vadd.f32 %v638, %v736
        %v753 = vadd.f32 %v639, %v735
        %v754 = vadd.f32 %v640, %v734
        %v755 = vadd.f32 %v641, %v733
        %v756 = vadd.f32 %v642, %v732
        %v757 = vadd.f32 %v643, %v731
        %v758 = vadd.f32 %v644, %v730
        %v759 = vadd.f32 %v645, %v729
        %v760 = vadd.f32 %v646, %v744
        %v761 = vld [vmem:[#allocation2 + $0x40] sm:$0xf]
        %v762 = vld [vmem:[#allocation2 + $0x44] sm:$0xf]
        %v763 = vld [vmem:[#allocation2 + $0x48] sm:$0xf]
        %v764 = vld [vmem:[#allocation2 + $0x4c] sm:$0xf]
        %v769 = vunpack.c.l.b16 %v761
        %v770 = vunpack.c.l.b16 %v762
        %v771 = vunpack.c.l.b16 %v763
        %v772 = vunpack.c.l.b16 %v764
        %v773 = vpack.c.b16 %v770, %v769
        %v774 = vpack.c.b16 %v772, %v771
        %777 = vmatpush.bf16.msra.mxu0 0
        %778 = vmatpush.bf16.msra.mxu0 0
        %779 = vmatpush.bf16.msra.mxu0 0
        %780 = vmatpush.bf16.msra.mxu0 0
        %781 = vmatpush.bf16.msra.mxu0 0
        %782 = vmatpush.bf16.msra.mxu0 0
        %783 = vmatpush.bf16.msra.mxu0 %v774
        %784 = vmatpush.bf16.msra.mxu0 %v773
        %785 = vmatmul.bf16.gmra.mxu0 %v365
        %v786 = vpop.f32.mrf.mxu0
        %v787 = vadd.f32 0.0, %v786
        %v788 = vpop.f32.mrf.mxu0
        %v789 = vadd.f32 0.0, %v788
        %790 = vmatmul.bf16.gmra.mxu0 %v368
        %v791 = vpop.f32.mrf.mxu0
        %v792 = vadd.f32 0.0, %v791
        %v793 = vpop.f32.mrf.mxu0
        %v794 = vadd.f32 0.0, %v793
        %795 = vmatmul.bf16.gmra.mxu0 %v371
        %v796 = vpop.f32.mrf.mxu0
        %v797 = vadd.f32 0.0, %v796
        %v798 = vpop.f32.mrf.mxu0
        %v799 = vadd.f32 0.0, %v798
        %800 = vmatmul.bf16.gmra.mxu0 %v374
        %v801 = vpop.f32.mrf.mxu0
        %v802 = vadd.f32 0.0, %v801
        %v803 = vpop.f32.mrf.mxu0
        %v804 = vadd.f32 0.0, %v803
        %805 = vmatmul.bf16.gmra.mxu0 %v377
        %v806 = vpop.f32.mrf.mxu0
        %v807 = vadd.f32 0.0, %v806
        %v808 = vpop.f32.mrf.mxu0
        %v809 = vadd.f32 0.0, %v808
        %810 = vmatmul.bf16.gmra.mxu0 %v380
        %v811 = vpop.f32.mrf.mxu0
        %v812 = vadd.f32 0.0, %v811
        %v813 = vpop.f32.mrf.mxu0
        %v814 = vadd.f32 0.0, %v813
        %815 = vmatmul.bf16.gmra.mxu0 %v383
        %v816 = vpop.f32.mrf.mxu0
        %v817 = vadd.f32 0.0, %v816
        %v818 = vpop.f32.mrf.mxu0
        %v819 = vadd.f32 0.0, %v818
        %820 = vmatmul.bf16.gmra.mxu0 %v386
        %v821 = vpop.f32.mrf.mxu0
        %v822 = vadd.f32 0.0, %v821
        %v823 = vpop.f32.mrf.mxu0
        %v824 = vadd.f32 0.0, %v823
        %825 = vdwg.mxu0
        %v826 = vrot.slane %v787, 4
        %v827 = vrot.slane %v789, 4
        %v828 = vrot.slane %v792, 4
        %v829 = vrot.slane %v794, 4
        %v830 = vrot.slane %v797, 4
        %v831 = vrot.slane %v799, 4
        %v832 = vrot.slane %v802, 4
        %v833 = vrot.slane %v804, 4
        %v834 = vrot.slane %v807, 4
        %v835 = vrot.slane %v809, 4
        %v836 = vrot.slane %v812, 4
        %v837 = vrot.slane %v814, 4
        %v838 = vrot.slane %v817, 4
        %v839 = vrot.slane %v819, 4
        %v840 = vrot.slane %v822, 4
        %v841 = vrot.slane %v824, 4
        %vm842 = vcmp.lt.s32.totalorder %v454, 4
        %v843 = vsel %vm842, %v840, %v841
        %v844 = vsel %vm842, %v839, %v840
        %v845 = vsel %vm842, %v838, %v839
        %v846 = vsel %vm842, %v837, %v838
        %v847 = vsel %vm842, %v836, %v837
        %v848 = vsel %vm842, %v835, %v836
        %v849 = vsel %vm842, %v834, %v835
        %v850 = vsel %vm842, %v833, %v834
        %v851 = vsel %vm842, %v832, %v833
        %v852 = vsel %vm842, %v831, %v832
        %v853 = vsel %vm842, %v830, %v831
        %v854 = vsel %vm842, %v829, %v830
        %v855 = vsel %vm842, %v828, %v829
        %v856 = vsel %vm842, %v827, %v828
        %v857 = vsel %vm842, %v826, %v827
        %v858 = vsel %vm842, %v841, %v826
        %v859 = vadd.f32 %v745, %v857
        %v860 = vadd.f32 %v746, %v856
        %v861 = vadd.f32 %v747, %v855
        %v862 = vadd.f32 %v748, %v854
        %v863 = vadd.f32 %v749, %v853
        %v864 = vadd.f32 %v750, %v852
        %v865 = vadd.f32 %v751, %v851
        %v866 = vadd.f32 %v752, %v850
        %v867 = vadd.f32 %v753, %v849
        %v868 = vadd.f32 %v754, %v848
        %v869 = vadd.f32 %v755, %v847
        %v870 = vadd.f32 %v756, %v846
        %v871 = vadd.f32 %v757, %v845
        %v872 = vadd.f32 %v758, %v844
        %v873 = vadd.f32 %v759, %v843
        %v874 = vadd.f32 %v760, %v858
        %v875 = vld [vmem:[%s2] sm:$0x1]
        %v877 = vperm.slane %v875, 0
        %v879 = vadd.f32 %v859, %v877
        %v880 = vadd.f32 %v860, %v877
        %v881 = vadd.f32 %v861, %v877
        %v882 = vadd.f32 %v862, %v877
        %v883 = vadd.f32 %v863, %v877
        %v884 = vadd.f32 %v864, %v877
        %v885 = vadd.f32 %v865, %v877
        %v886 = vadd.f32 %v866, %v877
        %v887 = vadd.f32 %v867, %v877
        %v888 = vadd.f32 %v868, %v877
        %v889 = vadd.f32 %v869, %v877
        %v890 = vadd.f32 %v870, %v877
        %v891 = vadd.f32 %v871, %v877
        %v892 = vadd.f32 %v872, %v877
        %v893 = vadd.f32 %v873, %v877
        %v894 = vadd.f32 %v874, %v877
        %v895 = vmax.f32 %v879, 0.0
        %v896 = vmax.f32 %v880, 0.0
        %v897 = vmax.f32 %v881, 0.0
        %v898 = vmax.f32 %v882, 0.0
        %v899 = vmax.f32 %v883, 0.0
        %v900 = vmax.f32 %v884, 0.0
        %v901 = vmax.f32 %v885, 0.0
        %v902 = vmax.f32 %v886, 0.0
        %v903 = vmax.f32 %v887, 0.0
        %v904 = vmax.f32 %v888, 0.0
        %v905 = vmax.f32 %v889, 0.0
        %v906 = vmax.f32 %v890, 0.0
        %v907 = vmax.f32 %v891, 0.0
        %v908 = vmax.f32 %v892, 0.0
        %v909 = vmax.f32 %v893, 0.0
        %v910 = vmax.f32 %v894, 0.0
        %v911 = vld [vmem:[%s3] sm:$0xff]
        %v912 = vld [vmem:[%s3 + $0x8] sm:$0xff]
        %v913 = vld [vmem:[%s3 + $0x10] sm:$0xff]
        %v914 = vld [vmem:[%s3 + $0x18] sm:$0xff]
        %v915 = vld [vmem:[%s3 + $0x20] sm:$0xff]
        %v916 = vld [vmem:[%s3 + $0x28] sm:$0xff]
        %v917 = vld [vmem:[%s3 + $0x30] sm:$0xff]
        %v918 = vld [vmem:[%s3 + $0x38] sm:$0xff]
        %v919 = vld [vmem:[%s3 + $0x40] sm:$0xff]
        %v920 = vld [vmem:[%s3 + $0x48] sm:$0xff]
        %v921 = vld [vmem:[%s3 + $0x50] sm:$0xff]
        %v922 = vld [vmem:[%s3 + $0x58] sm:$0xff]
        %v923 = vld [vmem:[%s3 + $0x60] sm:$0xff]
        %v924 = vld [vmem:[%s3 + $0x68] sm:$0xff]
        %v925 = vld [vmem:[%s3 + $0x70] sm:$0xff]
        %v926 = vld [vmem:[%s3 + $0x78] sm:$0xff]
        %v927 = vmul.f32 %v895, %v911
        %v928 = vmul.f32 %v896, %v912
        %v929 = vmul.f32 %v897, %v913
        %v930 = vmul.f32 %v898, %v914
        %v931 = vmul.f32 %v899, %v915
        %v932 = vmul.f32 %v900, %v916
        %v933 = vmul.f32 %v901, %v917
        %v934 = vmul.f32 %v902, %v918
        %v935 = vmul.f32 %v903, %v919
        %v936 = vmul.f32 %v904, %v920
        %v937 = vmul.f32 %v905, %v921
        %v938 = vmul.f32 %v906, %v922
        %v939 = vmul.f32 %v907, %v923
        %v940 = vmul.f32 %v908, %v924
        %v941 = vmul.f32 %v909, %v925
        %v942 = vmul.f32 %v910, %v926
        %v943 = vmax.f32 %v927, %v928
        %v944 = vrot.slane %v943, 4
        %v945 = vmax.f32 %v943, %v944
        %v946 = vrot.slane %v945, 2
        %v947 = vmax.f32 %v945, %v946
        %v948 = vrot.slane %v947, 1
        %v949 = vmax.f32 %v947, %v948
        %v950 = vmax.f32 %v929, %v930
        %v951 = vrot.slane %v950, 4
        %v952 = vmax.f32 %v950, %v951
        %v953 = vrot.slane %v952, 2
        %v954 = vmax.f32 %v952, %v953
        %v955 = vrot.slane %v954, 1
        %v956 = vmax.f32 %v954, %v955
        %v957 = vmax.f32 %v931, %v932
        %v958 = vrot.slane %v957, 4
        %v959 = vmax.f32 %v957, %v958
        %v960 = vrot.slane %v959, 2
        %v961 = vmax.f32 %v959, %v960
        %v962 = vrot.slane %v961, 1
        %v963 = vmax.f32 %v961, %v962
        %v964 = vmax.f32 %v933, %v934
        %v965 = vrot.slane %v964, 4
        %v966 = vmax.f32 %v964, %v965
        %v967 = vrot.slane %v966, 2
        %v968 = vmax.f32 %v966, %v967
        %v969 = vrot.slane %v968, 1
        %v970 = vmax.f32 %v968, %v969
        %v971 = vmax.f32 %v935, %v936
        %v972 = vrot.slane %v971, 4
        %v973 = vmax.f32 %v971, %v972
        %v974 = vrot.slane %v973, 2
        %v975 = vmax.f32 %v973, %v974
        %v976 = vrot.slane %v975, 1
        %v977 = vmax.f32 %v975, %v976
        %v978 = vmax.f32 %v937, %v938
        %v979 = vrot.slane %v978, 4
        %v980 = vmax.f32 %v978, %v979
        %v981 = vrot.slane %v980, 2
        %v982 = vmax.f32 %v980, %v981
        %v983 = vrot.slane %v982, 1
        %v984 = vmax.f32 %v982, %v983
        %v985 = vmax.f32 %v939, %v940
        %v986 = vrot.slane %v985, 4
        %v987 = vmax.f32 %v985, %v986
        %v988 = vrot.slane %v987, 2
        %v989 = vmax.f32 %v987, %v988
        %v990 = vrot.slane %v989, 1
        %v991 = vmax.f32 %v989, %v990
        %v992 = vmax.f32 %v941, %v942
        %v993 = vrot.slane %v992, 4
        %v994 = vmax.f32 %v992, %v993
        %v995 = vrot.slane %v994, 2
        %v996 = vmax.f32 %v994, %v995
        %v997 = vrot.slane %v996, 1
        %v998 = vmax.f32 %v996, %v997
        %v999 = vpack.c.bf16 %v949, %v949
        %v1000 = vpack.c.bf16 %v956, %v956
        %v1001 = vpack.c.bf16 %v963, %v963
        %v1002 = vpack.c.bf16 %v970, %v970
        %v1003 = vpack.c.bf16 %v977, %v977
        %v1004 = vpack.c.bf16 %v984, %v984
        %v1005 = vpack.c.bf16 %v991, %v991
        %v1006 = vpack.c.bf16 %v998, %v998
        %v1007 = vld [vmem:[#allocation5] sm:$0xf]
        %v1008 = vld [vmem:[#allocation5 + $0x4] sm:$0xf]
        %v1009 = vld [vmem:[#allocation5 + $0x8] sm:$0xf]
        %v1010 = vld [vmem:[#allocation5 + $0xc] sm:$0xf]
        %v1011 = vld [vmem:[#allocation5 + $0x10] sm:$0xf]
        %v1012 = vld [vmem:[#allocation5 + $0x14] sm:$0xf]
        %v1013 = vld [vmem:[#allocation5 + $0x18] sm:$0xf]
        %v1014 = vld [vmem:[#allocation5 + $0x1c] sm:$0xf]
        %v1015 = vld [vmem:[#allocation5 + $0x20] sm:$0xf]
        %v1016 = vld [vmem:[#allocation5 + $0x24] sm:$0xf]
        %v1017 = vld [vmem:[#allocation5 + $0x28] sm:$0xf]
        %v1018 = vld [vmem:[#allocation5 + $0x2c] sm:$0xf]
        %v1019 = vld [vmem:[#allocation5 + $0x30] sm:$0xf]
        %v1020 = vld [vmem:[#allocation5 + $0x34] sm:$0xf]
        %v1021 = vld [vmem:[#allocation5 + $0x38] sm:$0xf]
        %v1022 = vld [vmem:[#allocation5 + $0x3c] sm:$0xf]
        %v1023 = vld [vmem:[%s5] sm:$0x1]
        %v1025 = vperm.slane %v1023, 0
        %v1035 = vunpack.c.l.b16 %v999
        %v1036 = vunpack.c.l.b16 %v1000
        %v1037 = vunpack.c.l.b16 %v1001
        %v1038 = vunpack.c.l.b16 %v1002
        %v1039 = vunpack.c.l.b16 %v1003
        %v1040 = vunpack.c.l.b16 %v1004
        %v1041 = vunpack.c.l.b16 %v1005
        %v1042 = vunpack.c.l.b16 %v1006
        %vm1043 = vcmask 1041409
        %v1044 = vsel %vm1043, %v1036, %v1035
        %vm1045 = vcmask 1042434
        %v1046 = vsel %vm1045, %v1037, %v1044
        %vm1047 = vcmask 1043459
        %v1048 = vsel %vm1047, %v1038, %v1046
        %vm1049 = vcmask 1044484
        %v1050 = vsel %vm1049, %v1039, %v1048
        %vm1051 = vcmask 1045509
        %v1052 = vsel %vm1051, %v1040, %v1050
        %vm1053 = vcmask 1046534
        %v1054 = vsel %vm1053, %v1041, %v1052
        %vm1055 = vcmask 1047559
        %v1056 = vsel %vm1055, %v1042, %v1054
        %v1057 = vpack.c.b16 %v1056, %v1056
        %v1075 = vunpack.c.l.b16 %v1007
        %v1076 = vunpack.c.l.b16 %v1008
        %v1077 = vunpack.c.l.b16 %v1009
        %v1078 = vunpack.c.l.b16 %v1010
        %v1079 = vunpack.c.l.b16 %v1011
        %v1080 = vunpack.c.l.b16 %v1012
        %v1081 = vunpack.c.l.b16 %v1013
        %v1082 = vunpack.c.l.b16 %v1014
        %v1083 = vunpack.c.l.b16 %v1015
        %v1084 = vunpack.c.l.b16 %v1016
        %v1085 = vunpack.c.l.b16 %v1017
        %v1086 = vunpack.c.l.b16 %v1018
        %v1087 = vunpack.c.l.b16 %v1019
        %v1088 = vunpack.c.l.b16 %v1020
        %v1089 = vunpack.c.l.b16 %v1021
        %v1090 = vunpack.c.l.b16 %v1022
        %v1091 = vpack.c.b16 %v1076, %v1075
        %v1092 = vpack.c.b16 %v1078, %v1077
        %v1093 = vpack.c.b16 %v1080, %v1079
        %v1094 = vpack.c.b16 %v1082, %v1081
        %v1095 = vpack.c.b16 %v1084, %v1083
        %v1096 = vpack.c.b16 %v1086, %v1085
        %v1097 = vpack.c.b16 %v1088, %v1087
        %v1098 = vpack.c.b16 %v1090, %v1089
        %1107 = vmatpush.bf16.msra.mxu0 %v1098
        %1108 = vmatpush.bf16.msra.mxu0 %v1097
        %1109 = vmatpush.bf16.msra.mxu0 %v1096
        %1110 = vmatpush.bf16.msra.mxu0 %v1095
        %1111 = vmatpush.bf16.msra.mxu0 %v1094
        %1112 = vmatpush.bf16.msra.mxu0 %v1093
        %1113 = vmatpush.bf16.msra.mxu0 %v1092
        %1114 = vmatpush.bf16.msra.mxu0 %v1091
        %1115 = vmatmul.bf16.gmra.mxu0 %v1057
        %v1116 = vpop.f32.mrf.mxu0
        %v1117 = vadd.f32 %v1025, %v1116
        %v1118 = vpop.f32.mrf.mxu0
        %1119 = vdwg.mxu0
        %v1120 = vxor.u32 %v1117, 2147483648
        %v1121 = vmul.f32 %v1120, 1.442695
        %v1122 = vpow.pop %v1121
        %v1123 = vadd.f32 %v1122, 1.0
        %v1124 = vrcp.pop %v1123
        %v1125 = vmul.f32 %v1123, %v1124
        %v1126 = vsub.f32 1.0, %v1125
        %v1127 = vmul.f32 %v1124, %v1126
        %v1128 = vadd.f32 %v1124, %v1127
        %vm1129 = vweird.f32 %v1123
        %vm1130 = vweird.f32 %v1124
        %vm1131 = vmor %vm1129, %vm1130
        %v1132 = vsel %vm1131, %v1124, %v1128
        %v1133 = vand.u32 2147483647, %v1123
        %vm1134 = vcmp.eq.f32.partialorder %v1133, 8.507059e+37
        %v1135 = vand.u32 %v1123, 2147483648
        %v1136 = vor.u32 1.1754944e-38, %v1135
        %v1137 = vsel %vm1134, %v1136, %v1132
        %v1138 = vmul.f32 1.0, %v1137
        %1139 = vst [vmem:[%s279] sm:$0xff] %v1138
        %s1140 = sand.u32 %s161, 1
        %s1141 = scalar_lea.sflag [#allocation4], %s1140
        %s1142 = sand.u32 %s161, 1
        %s1143 = smul.addr %s1142, 8
        %s1144 = scalar_lea.vmem [#allocation7], %s1143
        // Predicated region
        $region53: #{tpu_custom_call.1} parent=43 // pred_check
          %p1145 = pneg %p171
        $region54: #{tpu_custom_call.1} parent=43 // pred_check_branch
          %1147 = sbr.rel (%p1145) target = $region56
        $region55: #{tpu_custom_call.1} parent=43 // pred_region
          %1149 = vsyncadd %s1141, 0
          %s1150 = smul.addr %s22, 8
          %s1151 = scalar_lea.hbm %s6, %s1150
          %s1153 = sshll.u32 %s1144, 4
          %s1154 = int_to_ptr.vmem [resolvable:$true] %s1153
          %s1155 = sshll.u32 %s1151, 4
          %s1156 = int_to_ptr.hbm [resolvable:$true] %s1155
          %1158 = dma.vmem_to_hbm [thread:$0]  %s1154, 128, %s1156, %s1141
        $region56: #{tpu_custom_call.1} parent=43 // pred_fallthru
          _
      $region44: #{tpu_custom_call.1} parent=5 // pred_fallthru
        _
      %p1159 = scmp.le.s32.totalorder 2, %s17
      // Predicated region
      $region57: #{tpu_custom_call.1} parent=5 // pred_check
        %p1160 = pneg %p1159
      $region58: #{tpu_custom_call.1} parent=5 // pred_check_branch
        %1162 = sbr.rel (%p1160) target = $region60
      $region59: #{tpu_custom_call.1} parent=5 // pred_region
        %s1163 = ssub.s32 %s17, 2
        // Predicated region
        $region61: #{tpu_custom_call.1} parent=59 // pred_check
          %p1164 = pneg %p177
        $region62: #{tpu_custom_call.1} parent=59 // pred_check_branch
          %1166 = sbr.rel (%p1164) target = $region64
        $region63: #{tpu_custom_call.1} parent=59 // pred_region
          %s1167 = sand.u32 %s162, 1
          %s1168 = scalar_lea.sflag [#allocation4], %s1167
          %s1169 = sand.u32 %s162, 1
          %s1170 = smul.addr %s1169, 8
          %s1171 = scalar_lea.vmem [#allocation7], %s1170
          %1173 = dma.done %s1168, 128
        $region64: #{tpu_custom_call.1} parent=59 // pred_fallthru
          _
      $region60: #{tpu_custom_call.1} parent=5 // pred_fallthru
        _
    $region6: #{tpu_custom_call.1} parent=1 // loop_footer
      %s21 = sadd.s32 1, %s17
    $region7: #{tpu_custom_call.1} parent=1 // loop_footer_branch
      %16 = sbr.rel target = $region3
    $region8: #{tpu_custom_call.1} parent=1 // loop_exit
      _
    %1174 = vsyncpa [#allocation3], 1
    %s1175 = scalar_lea.sflag [#allocation3], 1
    %1176 = vsyncpa %s1175, 1
    %1177 = vsyncpa [#allocation6], 1
    %1178 = vsyncpa [#allocation4], 1
    %s1179 = scalar_lea.sflag [#allocation4], 1
    %1180 = vsyncpa %s1179, 1

</llo_original>
